<compile_context>
chip_gen: v5e
topology: v5e:2x2
jax: 0.10.0
libtpu: 0.0.40
codegen_flags: <defaults>
</compile_context>

<pallas_src>
import functools

import jax
import jax.numpy as jnp
from jax.experimental import pallas as pl
from jax.experimental.pallas import tpu as pltpu


TB = 8  # batch rows gathered per grid step (multiple of 8 sublanes)


def _gather_kernel(ids_ref, table_hbm, out_ref, row_buf, sem, *, vocab):
    # ids_ref:   (B_pad,) int32, SMEM (scalar-prefetched user ids)
    # table_hbm: (V, D)   embedding table, left in HBM (pl.ANY, no auto-DMA)
    # out_ref:   (TB, D)  VMEM output tile for this grid step
    # row_buf:   (TB, D)  VMEM scratch, gather destination
    # sem:       (TB,)    DMA completion semaphores, one per row
    base = pl.program_id(0) * TB

    # Issue all row DMAs up front so they overlap each other.
    for r in range(TB):
        idx = ids_ref[base + r]
        # OOB policy: clamp to [0, V-1] (torch.nn.Embedding would raise; the
        # previous one-hot kernel silently produced zeros).
        idx = jnp.minimum(jnp.maximum(idx, 0), vocab - 1)
        pltpu.make_async_copy(
            table_hbm.at[pl.ds(idx, 1), :],
            row_buf.at[pl.ds(r, 1), :],
            sem.at[r],
        ).start()

    # Wait for all rows, then a single (8, D) vector store to the output tile.
    for r in range(TB):
        pltpu.make_async_copy(
            table_hbm.at[pl.ds(0, 1), :],
            row_buf.at[pl.ds(r, 1), :],
            sem.at[r],
        ).wait()

    out_ref[...] = row_buf[...]


def i_embedding_forward(user_id, table):
    """user_id: (B,) integer array; table: (V, D). Returns (B, 1, D)."""
    B = user_id.shape[0]
    V, D = table.shape

    # Pad batch to a multiple of the sublane-aligned tile.
    B_pad = ((B + TB - 1) // TB) * TB
    idx = user_id.astype(jnp.int32)
    if B_pad != B:
        idx = jnp.pad(idx, (0, B_pad - B))

    kernel = functools.partial(_gather_kernel, vocab=V)

    out = pl.pallas_call(
        kernel,
        out_shape=jax.ShapeDtypeStruct((B_pad, D), table.dtype),
        grid_spec=pltpu.PrefetchScalarGridSpec(
            num_scalar_prefetch=1,            # user ids -> SMEM
            grid=(B_pad // TB,),
            in_specs=[pl.BlockSpec(memory_space=pl.ANY)],   # table stays in HBM
            out_specs=pl.BlockSpec((TB, D), lambda t, ids: (t, 0)),
            scratch_shapes=[
                pltpu.VMEM((TB, D), table.dtype),
                pltpu.SemaphoreType.DMA((TB,)),
            ],
        ),
        compiler_params=pltpu.CompilerParams(
            dimension_semantics=("parallel",),  # v7x: split batch tiles over 2 TCs
        ),
    )(idx, table)

    out = out[:B]
    # phase[:, None, :] then cat(dim=-2) over the single user-side field.
    return out[:, None, :]


def make_params(key, num_users, emb_dim=16):
    """Deterministic xavier_uniform init of the user_id embedding table."""
    V = num_users + 1
    fan_in, fan_out = emb_dim, V            # torch fan convention for 2-D weight
    bound = (6.0 / (fan_in + fan_out)) ** 0.5
    table = jax.random.uniform(
        key, (V, emb_dim), dtype=jnp.float32, minval=-bound, maxval=bound
    )
    # modulus parameter exists in __init__ but is unused in forward.
    modulus = jnp.ones((1,), dtype=jnp.float32)
    return table, modulus


if __name__ == "__main__":
    key = jax.random.PRNGKey(0)
    k_tab, k_idx = jax.random.split(key)

    batch = 8
    num_users = 32          # config.feature_stastic['user_id']
    emb_dim = 16            # user_id -> 16 per the module

    table, _modulus = make_params(k_tab, num_users, emb_dim)
    user_id = jax.random.randint(k_idx, (batch,), 0, num_users + 1, dtype=jnp.int32)

    out = i_embedding_forward(user_id, table)
    out = jax.block_until_ready(out)

    # Cross-check against a plain JAX gather.
    ref = jnp.take(table, user_id, axis=0)[:, None, :]
    assert out.shape == (batch, 1, emb_dim)
    assert jnp.allclose(out, ref, atol=1e-6)

    print("KERNEL_OK")
</pallas_src>

<mosaic_0001>
module attributes {stable_mosaic.version = 11 : i64} {
  func.func @_gather_kernel(%arg0: i32, %arg1: memref<8xi32, #tpu.memory_space<smem>>, %arg2: memref<33x16xf32, #tpu.memory_space<any>>, %arg3: memref<8x16xf32, #tpu.memory_space<vmem>>, %arg4: memref<8x16xf32, #tpu.memory_space<vmem>>, %arg5: memref<8x!tpu.dma_semaphore, #tpu.memory_space<semaphore_mem>>) attributes {dimension_semantics = [#tpu.dimension_semantics<parallel>], iteration_bounds = array<i64: 1>, scalar_prefetch = 1 : i64, scratch_operands = 2 : i64, tpu.core_type = #tpu.core_type<tc>, window_params = [{}, {transform_indices = @transform_1, window_bounds = array<i64: 8, 16>}]} {
    %c8_i32 = arith.constant 8 : i32
    %0 = arith.muli %arg0, %c8_i32 : i32
    %c0_i32 = arith.constant 0 : i32
    %1 = arith.addi %0, %c0_i32 : i32
    %2 = arith.index_cast %1 : i32 to index
    %3 = memref.load %arg1[%2] : memref<8xi32, #tpu.memory_space<smem>>
    %c0_i32_0 = arith.constant 0 : i32
    %4 = arith.maxsi %3, %c0_i32_0 : i32
    %c32_i32 = arith.constant 32 : i32
    %5 = arith.minsi %4, %c32_i32 : i32
    %c0_i32_1 = arith.constant 0 : i32
    %c0_i32_2 = arith.constant 0 : i32
    %6 = tpu.memref_slice %arg2[%5, %c0_i32_2] : memref<33x16xf32, #tpu.memory_space<any>> -> memref<1x16xf32, #tpu.memory_space<any>>
    %c0_i32_3 = arith.constant 0 : i32
    %c0_i32_4 = arith.constant 0 : i32
    %7 = tpu.memref_slice %arg4[%c0_i32_3, %c0_i32_4] : memref<8x16xf32, #tpu.memory_space<vmem>> -> memref<1x16xf32, #tpu.memory_space<vmem>>
    %8 = tpu.memref_slice %arg5[%c0_i32_1] : memref<8x!tpu.dma_semaphore, #tpu.memory_space<semaphore_mem>> -> memref<1x!tpu.dma_semaphore, #tpu.memory_space<semaphore_mem>>
    %9 = tpu.memref_squeeze %8 : memref<1x!tpu.dma_semaphore, #tpu.memory_space<semaphore_mem>> -> memref<!tpu.dma_semaphore, #tpu.memory_space<semaphore_mem>>
    tpu.enqueue_dma source(%6 : memref<1x16xf32, #tpu.memory_space<any>>) target(%7 : memref<1x16xf32, #tpu.memory_space<vmem>>) target_semaphore(%9 : memref<!tpu.dma_semaphore, #tpu.memory_space<semaphore_mem>>)
    %c1_i32 = arith.constant 1 : i32
    %10 = arith.addi %0, %c1_i32 : i32
    %11 = arith.index_cast %10 : i32 to index
    %12 = memref.load %arg1[%11] : memref<8xi32, #tpu.memory_space<smem>>
    %c0_i32_5 = arith.constant 0 : i32
    %13 = arith.maxsi %12, %c0_i32_5 : i32
    %c32_i32_6 = arith.constant 32 : i32
    %14 = arith.minsi %13, %c32_i32_6 : i32
    %c1_i32_7 = arith.constant 1 : i32
    %c0_i32_8 = arith.constant 0 : i32
    %15 = tpu.memref_slice %arg2[%14, %c0_i32_8] : memref<33x16xf32, #tpu.memory_space<any>> -> memref<1x16xf32, #tpu.memory_space<any>>
    %c1_i32_9 = arith.constant 1 : i32
    %c0_i32_10 = arith.constant 0 : i32
    %16 = tpu.memref_slice %arg4[%c1_i32_9, %c0_i32_10] : memref<8x16xf32, #tpu.memory_space<vmem>> -> memref<1x16xf32, #tpu.memory_space<vmem>>
    %17 = tpu.memref_slice %arg5[%c1_i32_7] : memref<8x!tpu.dma_semaphore, #tpu.memory_space<semaphore_mem>> -> memref<1x!tpu.dma_semaphore, #tpu.memory_space<semaphore_mem>>
    %18 = tpu.memref_squeeze %17 : memref<1x!tpu.dma_semaphore, #tpu.memory_space<semaphore_mem>> -> memref<!tpu.dma_semaphore, #tpu.memory_space<semaphore_mem>>
    tpu.enqueue_dma source(%15 : memref<1x16xf32, #tpu.memory_space<any>>) target(%16 : memref<1x16xf32, #tpu.memory_space<vmem>>) target_semaphore(%18 : memref<!tpu.dma_semaphore, #tpu.memory_space<semaphore_mem>>)
    %c2_i32 = arith.constant 2 : i32
    %19 = arith.addi %0, %c2_i32 : i32
    %20 = arith.index_cast %19 : i32 to index
    %21 = memref.load %arg1[%20] : memref<8xi32, #tpu.memory_space<smem>>
    %c0_i32_11 = arith.constant 0 : i32
    %22 = arith.maxsi %21, %c0_i32_11 : i32
    %c32_i32_12 = arith.constant 32 : i32
    %23 = arith.minsi %22, %c32_i32_12 : i32
    %c2_i32_13 = arith.constant 2 : i32
    %c0_i32_14 = arith.constant 0 : i32
    %24 = tpu.memref_slice %arg2[%23, %c0_i32_14] : memref<33x16xf32, #tpu.memory_space<any>> -> memref<1x16xf32, #tpu.memory_space<any>>
    %c2_i32_15 = arith.constant 2 : i32
    %c0_i32_16 = arith.constant 0 : i32
    %25 = tpu.memref_slice %arg4[%c2_i32_15, %c0_i32_16] : memref<8x16xf32, #tpu.memory_space<vmem>> -> memref<1x16xf32, #tpu.memory_space<vmem>>
    %26 = tpu.memref_slice %arg5[%c2_i32_13] : memref<8x!tpu.dma_semaphore, #tpu.memory_space<semaphore_mem>> -> memref<1x!tpu.dma_semaphore, #tpu.memory_space<semaphore_mem>>
    %27 = tpu.memref_squeeze %26 : memref<1x!tpu.dma_semaphore, #tpu.memory_space<semaphore_mem>> -> memref<!tpu.dma_semaphore, #tpu.memory_space<semaphore_mem>>
    tpu.enqueue_dma source(%24 : memref<1x16xf32, #tpu.memory_space<any>>) target(%25 : memref<1x16xf32, #tpu.memory_space<vmem>>) target_semaphore(%27 : memref<!tpu.dma_semaphore, #tpu.memory_space<semaphore_mem>>)
    %c3_i32 = arith.constant 3 : i32
    %28 = arith.addi %0, %c3_i32 : i32
    %29 = arith.index_cast %28 : i32 to index
    %30 = memref.load %arg1[%29] : memref<8xi32, #tpu.memory_space<smem>>
    %c0_i32_17 = arith.constant 0 : i32
    %31 = arith.maxsi %30, %c0_i32_17 : i32
    %c32_i32_18 = arith.constant 32 : i32
    %32 = arith.minsi %31, %c32_i32_18 : i32
    %c3_i32_19 = arith.constant 3 : i32
    %c0_i32_20 = arith.constant 0 : i32
    %33 = tpu.memref_slice %arg2[%32, %c0_i32_20] : memref<33x16xf32, #tpu.memory_space<any>> -> memref<1x16xf32, #tpu.memory_space<any>>
    %c3_i32_21 = arith.constant 3 : i32
    %c0_i32_22 = arith.constant 0 : i32
    %34 = tpu.memref_slice %arg4[%c3_i32_21, %c0_i32_22] : memref<8x16xf32, #tpu.memory_space<vmem>> -> memref<1x16xf32, #tpu.memory_space<vmem>>
    %35 = tpu.memref_slice %arg5[%c3_i32_19] : memref<8x!tpu.dma_semaphore, #tpu.memory_space<semaphore_mem>> -> memref<1x!tpu.dma_semaphore, #tpu.memory_space<semaphore_mem>>
    %36 = tpu.memref_squeeze %35 : memref<1x!tpu.dma_semaphore, #tpu.memory_space<semaphore_mem>> -> memref<!tpu.dma_semaphore, #tpu.memory_space<semaphore_mem>>
    tpu.enqueue_dma source(%33 : memref<1x16xf32, #tpu.memory_space<any>>) target(%34 : memref<1x16xf32, #tpu.memory_space<vmem>>) target_semaphore(%36 : memref<!tpu.dma_semaphore, #tpu.memory_space<semaphore_mem>>)
    %c4_i32 = arith.constant 4 : i32
    %37 = arith.addi %0, %c4_i32 : i32
    %38 = arith.index_cast %37 : i32 to index
    %39 = memref.load %arg1[%38] : memref<8xi32, #tpu.memory_space<smem>>
    %c0_i32_23 = arith.constant 0 : i32
    %40 = arith.maxsi %39, %c0_i32_23 : i32
    %c32_i32_24 = arith.constant 32 : i32
    %41 = arith.minsi %40, %c32_i32_24 : i32
    %c4_i32_25 = arith.constant 4 : i32
    %c0_i32_26 = arith.constant 0 : i32
    %42 = tpu.memref_slice %arg2[%41, %c0_i32_26] : memref<33x16xf32, #tpu.memory_space<any>> -> memref<1x16xf32, #tpu.memory_space<any>>
    %c4_i32_27 = arith.constant 4 : i32
    %c0_i32_28 = arith.constant 0 : i32
    %43 = tpu.memref_slice %arg4[%c4_i32_27, %c0_i32_28] : memref<8x16xf32, #tpu.memory_space<vmem>> -> memref<1x16xf32, #tpu.memory_space<vmem>>
    %44 = tpu.memref_slice %arg5[%c4_i32_25] : memref<8x!tpu.dma_semaphore, #tpu.memory_space<semaphore_mem>> -> memref<1x!tpu.dma_semaphore, #tpu.memory_space<semaphore_mem>>
    %45 = tpu.memref_squeeze %44 : memref<1x!tpu.dma_semaphore, #tpu.memory_space<semaphore_mem>> -> memref<!tpu.dma_semaphore, #tpu.memory_space<semaphore_mem>>
    tpu.enqueue_dma source(%42 : memref<1x16xf32, #tpu.memory_space<any>>) target(%43 : memref<1x16xf32, #tpu.memory_space<vmem>>) target_semaphore(%45 : memref<!tpu.dma_semaphore, #tpu.memory_space<semaphore_mem>>)
    %c5_i32 = arith.constant 5 : i32
    %46 = arith.addi %0, %c5_i32 : i32
    %47 = arith.index_cast %46 : i32 to index
    %48 = memref.load %arg1[%47] : memref<8xi32, #tpu.memory_space<smem>>
    %c0_i32_29 = arith.constant 0 : i32
    %49 = arith.maxsi %48, %c0_i32_29 : i32
    %c32_i32_30 = arith.constant 32 : i32
    %50 = arith.minsi %49, %c32_i32_30 : i32
    %c5_i32_31 = arith.constant 5 : i32
    %c0_i32_32 = arith.constant 0 : i32
    %51 = tpu.memref_slice %arg2[%50, %c0_i32_32] : memref<33x16xf32, #tpu.memory_space<any>> -> memref<1x16xf32, #tpu.memory_space<any>>
    %c5_i32_33 = arith.constant 5 : i32
    %c0_i32_34 = arith.constant 0 : i32
    %52 = tpu.memref_slice %arg4[%c5_i32_33, %c0_i32_34] : memref<8x16xf32, #tpu.memory_space<vmem>> -> memref<1x16xf32, #tpu.memory_space<vmem>>
    %53 = tpu.memref_slice %arg5[%c5_i32_31] : memref<8x!tpu.dma_semaphore, #tpu.memory_space<semaphore_mem>> -> memref<1x!tpu.dma_semaphore, #tpu.memory_space<semaphore_mem>>
    %54 = tpu.memref_squeeze %53 : memref<1x!tpu.dma_semaphore, #tpu.memory_space<semaphore_mem>> -> memref<!tpu.dma_semaphore, #tpu.memory_space<semaphore_mem>>
    tpu.enqueue_dma source(%51 : memref<1x16xf32, #tpu.memory_space<any>>) target(%52 : memref<1x16xf32, #tpu.memory_space<vmem>>) target_semaphore(%54 : memref<!tpu.dma_semaphore, #tpu.memory_space<semaphore_mem>>)
    %c6_i32 = arith.constant 6 : i32
    %55 = arith.addi %0, %c6_i32 : i32
    %56 = arith.index_cast %55 : i32 to index
    %57 = memref.load %arg1[%56] : memref<8xi32, #tpu.memory_space<smem>>
    %c0_i32_35 = arith.constant 0 : i32
    %58 = arith.maxsi %57, %c0_i32_35 : i32
    %c32_i32_36 = arith.constant 32 : i32
    %59 = arith.minsi %58, %c32_i32_36 : i32
    %c6_i32_37 = arith.constant 6 : i32
    %c0_i32_38 = arith.constant 0 : i32
    %60 = tpu.memref_slice %arg2[%59, %c0_i32_38] : memref<33x16xf32, #tpu.memory_space<any>> -> memref<1x16xf32, #tpu.memory_space<any>>
    %c6_i32_39 = arith.constant 6 : i32
    %c0_i32_40 = arith.constant 0 : i32
    %61 = tpu.memref_slice %arg4[%c6_i32_39, %c0_i32_40] : memref<8x16xf32, #tpu.memory_space<vmem>> -> memref<1x16xf32, #tpu.memory_space<vmem>>
    %62 = tpu.memref_slice %arg5[%c6_i32_37] : memref<8x!tpu.dma_semaphore, #tpu.memory_space<semaphore_mem>> -> memref<1x!tpu.dma_semaphore, #tpu.memory_space<semaphore_mem>>
    %63 = tpu.memref_squeeze %62 : memref<1x!tpu.dma_semaphore, #tpu.memory_space<semaphore_mem>> -> memref<!tpu.dma_semaphore, #tpu.memory_space<semaphore_mem>>
    tpu.enqueue_dma source(%60 : memref<1x16xf32, #tpu.memory_space<any>>) target(%61 : memref<1x16xf32, #tpu.memory_space<vmem>>) target_semaphore(%63 : memref<!tpu.dma_semaphore, #tpu.memory_space<semaphore_mem>>)
    %c7_i32 = arith.constant 7 : i32
    %64 = arith.addi %0, %c7_i32 : i32
    %65 = arith.index_cast %64 : i32 to index
    %66 = memref.load %arg1[%65] : memref<8xi32, #tpu.memory_space<smem>>
    %c0_i32_41 = arith.constant 0 : i32
    %67 = arith.maxsi %66, %c0_i32_41 : i32
    %c32_i32_42 = arith.constant 32 : i32
    %68 = arith.minsi %67, %c32_i32_42 : i32
    %c7_i32_43 = arith.constant 7 : i32
    %c0_i32_44 = arith.constant 0 : i32
    %69 = tpu.memref_slice %arg2[%68, %c0_i32_44] : memref<33x16xf32, #tpu.memory_space<any>> -> memref<1x16xf32, #tpu.memory_space<any>>
    %c7_i32_45 = arith.constant 7 : i32
    %c0_i32_46 = arith.constant 0 : i32
    %70 = tpu.memref_slice %arg4[%c7_i32_45, %c0_i32_46] : memref<8x16xf32, #tpu.memory_space<vmem>> -> memref<1x16xf32, #tpu.memory_space<vmem>>
    %71 = tpu.memref_slice %arg5[%c7_i32_43] : memref<8x!tpu.dma_semaphore, #tpu.memory_space<semaphore_mem>> -> memref<1x!tpu.dma_semaphore, #tpu.memory_space<semaphore_mem>>
    %72 = tpu.memref_squeeze %71 : memref<1x!tpu.dma_semaphore, #tpu.memory_space<semaphore_mem>> -> memref<!tpu.dma_semaphore, #tpu.memory_space<semaphore_mem>>
    tpu.enqueue_dma source(%69 : memref<1x16xf32, #tpu.memory_space<any>>) target(%70 : memref<1x16xf32, #tpu.memory_space<vmem>>) target_semaphore(%72 : memref<!tpu.dma_semaphore, #tpu.memory_space<semaphore_mem>>)
    %c0_i32_47 = arith.constant 0 : i32
    %c0_i32_48 = arith.constant 0 : i32
    %c0_i32_49 = arith.constant 0 : i32
    %73 = tpu.memref_slice %arg2[%c0_i32_48, %c0_i32_49] : memref<33x16xf32, #tpu.memory_space<any>> -> memref<1x16xf32, #tpu.memory_space<any>>
    %c0_i32_50 = arith.constant 0 : i32
    %c0_i32_51 = arith.constant 0 : i32
    %74 = tpu.memref_slice %arg4[%c0_i32_50, %c0_i32_51] : memref<8x16xf32, #tpu.memory_space<vmem>> -> memref<1x16xf32, #tpu.memory_space<vmem>>
    %75 = tpu.memref_slice %arg5[%c0_i32_47] : memref<8x!tpu.dma_semaphore, #tpu.memory_space<semaphore_mem>> -> memref<1x!tpu.dma_semaphore, #tpu.memory_space<semaphore_mem>>
    %76 = tpu.memref_squeeze %75 : memref<1x!tpu.dma_semaphore, #tpu.memory_space<semaphore_mem>> -> memref<!tpu.dma_semaphore, #tpu.memory_space<semaphore_mem>>
    tpu.wait_dma2 semaphore(%76 : memref<!tpu.dma_semaphore, #tpu.memory_space<semaphore_mem>>) src(%73 : memref<1x16xf32, #tpu.memory_space<any>>) dst(%74 : memref<1x16xf32, #tpu.memory_space<vmem>>)
    %c1_i32_52 = arith.constant 1 : i32
    %c0_i32_53 = arith.constant 0 : i32
    %c0_i32_54 = arith.constant 0 : i32
    %77 = tpu.memref_slice %arg2[%c0_i32_53, %c0_i32_54] : memref<33x16xf32, #tpu.memory_space<any>> -> memref<1x16xf32, #tpu.memory_space<any>>
    %c1_i32_55 = arith.constant 1 : i32
    %c0_i32_56 = arith.constant 0 : i32
    %78 = tpu.memref_slice %arg4[%c1_i32_55, %c0_i32_56] : memref<8x16xf32, #tpu.memory_space<vmem>> -> memref<1x16xf32, #tpu.memory_space<vmem>>
    %79 = tpu.memref_slice %arg5[%c1_i32_52] : memref<8x!tpu.dma_semaphore, #tpu.memory_space<semaphore_mem>> -> memref<1x!tpu.dma_semaphore, #tpu.memory_space<semaphore_mem>>
    %80 = tpu.memref_squeeze %79 : memref<1x!tpu.dma_semaphore, #tpu.memory_space<semaphore_mem>> -> memref<!tpu.dma_semaphore, #tpu.memory_space<semaphore_mem>>
    tpu.wait_dma2 semaphore(%80 : memref<!tpu.dma_semaphore, #tpu.memory_space<semaphore_mem>>) src(%77 : memref<1x16xf32, #tpu.memory_space<any>>) dst(%78 : memref<1x16xf32, #tpu.memory_space<vmem>>)
    %c2_i32_57 = arith.constant 2 : i32
    %c0_i32_58 = arith.constant 0 : i32
    %c0_i32_59 = arith.constant 0 : i32
    %81 = tpu.memref_slice %arg2[%c0_i32_58, %c0_i32_59] : memref<33x16xf32, #tpu.memory_space<any>> -> memref<1x16xf32, #tpu.memory_space<any>>
    %c2_i32_60 = arith.constant 2 : i32
    %c0_i32_61 = arith.constant 0 : i32
    %82 = tpu.memref_slice %arg4[%c2_i32_60, %c0_i32_61] : memref<8x16xf32, #tpu.memory_space<vmem>> -> memref<1x16xf32, #tpu.memory_space<vmem>>
    %83 = tpu.memref_slice %arg5[%c2_i32_57] : memref<8x!tpu.dma_semaphore, #tpu.memory_space<semaphore_mem>> -> memref<1x!tpu.dma_semaphore, #tpu.memory_space<semaphore_mem>>
    %84 = tpu.memref_squeeze %83 : memref<1x!tpu.dma_semaphore, #tpu.memory_space<semaphore_mem>> -> memref<!tpu.dma_semaphore, #tpu.memory_space<semaphore_mem>>
    tpu.wait_dma2 semaphore(%84 : memref<!tpu.dma_semaphore, #tpu.memory_space<semaphore_mem>>) src(%81 : memref<1x16xf32, #tpu.memory_space<any>>) dst(%82 : memref<1x16xf32, #tpu.memory_space<vmem>>)
    %c3_i32_62 = arith.constant 3 : i32
    %c0_i32_63 = arith.constant 0 : i32
    %c0_i32_64 = arith.constant 0 : i32
    %85 = tpu.memref_slice %arg2[%c0_i32_63, %c0_i32_64] : memref<33x16xf32, #tpu.memory_space<any>> -> memref<1x16xf32, #tpu.memory_space<any>>
    %c3_i32_65 = arith.constant 3 : i32
    %c0_i32_66 = arith.constant 0 : i32
    %86 = tpu.memref_slice %arg4[%c3_i32_65, %c0_i32_66] : memref<8x16xf32, #tpu.memory_space<vmem>> -> memref<1x16xf32, #tpu.memory_space<vmem>>
    %87 = tpu.memref_slice %arg5[%c3_i32_62] : memref<8x!tpu.dma_semaphore, #tpu.memory_space<semaphore_mem>> -> memref<1x!tpu.dma_semaphore, #tpu.memory_space<semaphore_mem>>
    %88 = tpu.memref_squeeze %87 : memref<1x!tpu.dma_semaphore, #tpu.memory_space<semaphore_mem>> -> memref<!tpu.dma_semaphore, #tpu.memory_space<semaphore_mem>>
    tpu.wait_dma2 semaphore(%88 : memref<!tpu.dma_semaphore, #tpu.memory_space<semaphore_mem>>) src(%85 : memref<1x16xf32, #tpu.memory_space<any>>) dst(%86 : memref<1x16xf32, #tpu.memory_space<vmem>>)
    %c4_i32_67 = arith.constant 4 : i32
    %c0_i32_68 = arith.constant 0 : i32
    %c0_i32_69 = arith.constant 0 : i32
    %89 = tpu.memref_slice %arg2[%c0_i32_68, %c0_i32_69] : memref<33x16xf32, #tpu.memory_space<any>> -> memref<1x16xf32, #tpu.memory_space<any>>
    %c4_i32_70 = arith.constant 4 : i32
    %c0_i32_71 = arith.constant 0 : i32
    %90 = tpu.memref_slice %arg4[%c4_i32_70, %c0_i32_71] : memref<8x16xf32, #tpu.memory_space<vmem>> -> memref<1x16xf32, #tpu.memory_space<vmem>>
    %91 = tpu.memref_slice %arg5[%c4_i32_67] : memref<8x!tpu.dma_semaphore, #tpu.memory_space<semaphore_mem>> -> memref<1x!tpu.dma_semaphore, #tpu.memory_space<semaphore_mem>>
    %92 = tpu.memref_squeeze %91 : memref<1x!tpu.dma_semaphore, #tpu.memory_space<semaphore_mem>> -> memref<!tpu.dma_semaphore, #tpu.memory_space<semaphore_mem>>
    tpu.wait_dma2 semaphore(%92 : memref<!tpu.dma_semaphore, #tpu.memory_space<semaphore_mem>>) src(%89 : memref<1x16xf32, #tpu.memory_space<any>>) dst(%90 : memref<1x16xf32, #tpu.memory_space<vmem>>)
    %c5_i32_72 = arith.constant 5 : i32
    %c0_i32_73 = arith.constant 0 : i32
    %c0_i32_74 = arith.constant 0 : i32
    %93 = tpu.memref_slice %arg2[%c0_i32_73, %c0_i32_74] : memref<33x16xf32, #tpu.memory_space<any>> -> memref<1x16xf32, #tpu.memory_space<any>>
    %c5_i32_75 = arith.constant 5 : i32
    %c0_i32_76 = arith.constant 0 : i32
    %94 = tpu.memref_slice %arg4[%c5_i32_75, %c0_i32_76] : memref<8x16xf32, #tpu.memory_space<vmem>> -> memref<1x16xf32, #tpu.memory_space<vmem>>
    %95 = tpu.memref_slice %arg5[%c5_i32_72] : memref<8x!tpu.dma_semaphore, #tpu.memory_space<semaphore_mem>> -> memref<1x!tpu.dma_semaphore, #tpu.memory_space<semaphore_mem>>
    %96 = tpu.memref_squeeze %95 : memref<1x!tpu.dma_semaphore, #tpu.memory_space<semaphore_mem>> -> memref<!tpu.dma_semaphore, #tpu.memory_space<semaphore_mem>>
    tpu.wait_dma2 semaphore(%96 : memref<!tpu.dma_semaphore, #tpu.memory_space<semaphore_mem>>) src(%93 : memref<1x16xf32, #tpu.memory_space<any>>) dst(%94 : memref<1x16xf32, #tpu.memory_space<vmem>>)
    %c6_i32_77 = arith.constant 6 : i32
    %c0_i32_78 = arith.constant 0 : i32
    %c0_i32_79 = arith.constant 0 : i32
    %97 = tpu.memref_slice %arg2[%c0_i32_78, %c0_i32_79] : memref<33x16xf32, #tpu.memory_space<any>> -> memref<1x16xf32, #tpu.memory_space<any>>
    %c6_i32_80 = arith.constant 6 : i32
    %c0_i32_81 = arith.constant 0 : i32
    %98 = tpu.memref_slice %arg4[%c6_i32_80, %c0_i32_81] : memref<8x16xf32, #tpu.memory_space<vmem>> -> memref<1x16xf32, #tpu.memory_space<vmem>>
    %99 = tpu.memref_slice %arg5[%c6_i32_77] : memref<8x!tpu.dma_semaphore, #tpu.memory_space<semaphore_mem>> -> memref<1x!tpu.dma_semaphore, #tpu.memory_space<semaphore_mem>>
    %100 = tpu.memref_squeeze %99 : memref<1x!tpu.dma_semaphore, #tpu.memory_space<semaphore_mem>> -> memref<!tpu.dma_semaphore, #tpu.memory_space<semaphore_mem>>
    tpu.wait_dma2 semaphore(%100 : memref<!tpu.dma_semaphore, #tpu.memory_space<semaphore_mem>>) src(%97 : memref<1x16xf32, #tpu.memory_space<any>>) dst(%98 : memref<1x16xf32, #tpu.memory_space<vmem>>)
    %c7_i32_82 = arith.constant 7 : i32
    %c0_i32_83 = arith.constant 0 : i32
    %c0_i32_84 = arith.constant 0 : i32
    %101 = tpu.memref_slice %arg2[%c0_i32_83, %c0_i32_84] : memref<33x16xf32, #tpu.memory_space<any>> -> memref<1x16xf32, #tpu.memory_space<any>>
    %c7_i32_85 = arith.constant 7 : i32
    %c0_i32_86 = arith.constant 0 : i32
    %102 = tpu.memref_slice %arg4[%c7_i32_85, %c0_i32_86] : memref<8x16xf32, #tpu.memory_space<vmem>> -> memref<1x16xf32, #tpu.memory_space<vmem>>
    %103 = tpu.memref_slice %arg5[%c7_i32_82] : memref<8x!tpu.dma_semaphore, #tpu.memory_space<semaphore_mem>> -> memref<1x!tpu.dma_semaphore, #tpu.memory_space<semaphore_mem>>
    %104 = tpu.memref_squeeze %103 : memref<1x!tpu.dma_semaphore, #tpu.memory_space<semaphore_mem>> -> memref<!tpu.dma_semaphore, #tpu.memory_space<semaphore_mem>>
    tpu.wait_dma2 semaphore(%104 : memref<!tpu.dma_semaphore, #tpu.memory_space<semaphore_mem>>) src(%101 : memref<1x16xf32, #tpu.memory_space<any>>) dst(%102 : memref<1x16xf32, #tpu.memory_space<vmem>>)
    %c0 = arith.constant 0 : index
    %c0_87 = arith.constant 0 : index
    %105 = vector.load %arg4[%c0, %c0_87] : memref<8x16xf32, #tpu.memory_space<vmem>>, vector<8x16xf32>
    %c0_88 = arith.constant 0 : index
    %c0_89 = arith.constant 0 : index
    %106 = vector.load %arg3[%c0_88, %c0_89] : memref<8x16xf32, #tpu.memory_space<vmem>>, vector<8x16xf32>
    tpu.vector_store %arg3[%c0_88, %c0_89], %105 {strides = array<i32>} : memref<8x16xf32, #tpu.memory_space<vmem>>, vector<8x16xf32>,
    return
  }
  func.func @transform_1(%arg0: i32, %arg1: memref<8xi32, #tpu.memory_space<smem>>) -> (i32, i32) {
    %c0_i32 = arith.constant 0 : i32
    %c0_i32_0 = arith.constant 0 : i32
    return %arg0, %c0_i32 : i32, i32
  }
}

</mosaic_0001>

<llo_original>
// kernel: tpu_custom_call.1
$region0: #{tpu_custom_call.1}
  #allocation0 [shape = 'u32[]', space=smem, size = 0x4, offset = 0x4, fixed_abs, tag = 'smem constant byte address 0x4 - core index']
  #allocation1 [shape = 'u32[72,128]{1,0:T(1,128)}', space=vmem, size = 0x9000, scoped, tag = 'internal scratch']
  #allocation2 [shape = 'f32[8,16]{1,0:T(8,128)}', space=vmem, size = 0x1000, scoped, tag = 'scratch operand']
  #allocation3 [shape = 's32[8]{0}', space=sflag, size = 0x20, scoped, tag = 'scratch operand']
  #allocation4 [shape = 's32[1]{0}', space=sflag, size = 0x4, scoped, tag = 'scoped memory for tpu_custom_call.1']
  #allocation5 [shape = 'u8[512]{0}', space=smem, size = 0x200, scoped, tag = 'prefetched SMEM operand 0']
  #allocation8 [shape = 's32[]', space=sflag, size = 0x4, offset = 0, fixed_abs, tag = 'sflag constant byte address 0x0 - dummy sync flag']
  #allocation9 [shape = 's32[]', space=sflag, size = 0x4, offset = 0, fixed_abs, tag = 'sflag constant byte address 0x0 - dummy sync flag']
  #allocation10 [shape = 's32[]', space=sflag, size = 0x4, offset = 0, fixed_abs, tag = 'sflag constant byte address 0x0 - dummy sync flag']
  #allocation11 [shape = 's32[]', space=sflag, size = 0x4, offset = 0, fixed_abs, tag = 'sflag constant byte address 0x0 - dummy sync flag']
  #allocation12 [shape = 's32[]', space=sflag, size = 0x4, offset = 0, fixed_abs, tag = 'sflag constant byte address 0x0 - dummy sync flag']
  #allocation13 [shape = 's32[]', space=sflag, size = 0x4, offset = 0, fixed_abs, tag = 'sflag constant byte address 0x0 - dummy sync flag']
  #allocation14 [shape = 's32[]', space=sflag, size = 0x4, offset = 0, fixed_abs, tag = 'sflag constant byte address 0x0 - dummy sync flag']
  #allocation15 [shape = 's32[]', space=sflag, size = 0x4, offset = 0, fixed_abs, tag = 'sflag constant byte address 0x0 - dummy sync flag']
  %s0 = inlined_call_operand.vmem [shape: s32[8], index: 0, kind: input, shape index: {}]
  %s1 = inlined_call_operand.vmem [shape: f32[33,16], index: 1, kind: input, shape index: {}]
  %s2 = inlined_call_operand.hbm [shape: f32[8,16], index: 2, kind: output, shape index: {}]
  %s3 = sld [smem:[#allocation0]]
  $region250: #{tpu_custom_call.1} parent=0
    _
  %s5 = ssub.s32 1, %s3
  %s6 = scalar_select 0, %s5, %s3
  %s8 = sshll.u32 %s0, 4
  %s9 = int_to_ptr.vmem [resolvable:$true] %s8
  %11 = dma.vmem_to_smem %s9, 16, [#allocation5], [#allocation4]
  %13 = dma.done [#allocation4], 16
  %14 = sfence
  $region1: #{tpu_custom_call.1} parent=0
    #allocation6 [shape = 'u8[4096]{0}', space=vmem, size = 0x1000, scoped, tag = 'output window, operand 0, single buffered']
    #allocation7 [shape = 's32[1]{0}', space=sflag, size = 0x4, scoped, tag = 'scoped memory for tpu_custom_call.1']
    %15 = vsyncpa [#allocation7], 0
    %s16 = smul.u32 0, 8
    %s17 = sld [smem:[#allocation5 + %s16]]
    %p18 = scmp.gt.s32.totalorder %s17, 0
    %s19 = scalar_select %p18, %s17, 0
    %p20 = scmp.lt.s32.totalorder %s19, 32
    %s21 = scalar_select %p20, %s19, 32
    %s22 = scalar_lea.vmem %s1, %s21
    // Predicated region
    $region2: #{tpu_custom_call.1} parent=1 // pred_check
      _
    $region3: #{tpu_custom_call.1} parent=1 // pred_check_branch
      %24 = sbr.rel target = $region5
    $region4: #{tpu_custom_call.1} parent=1 // pred_region
      // Predicated region
      $region17: #{tpu_custom_call.1} parent=4 // pred_check
        _
      $region18: #{tpu_custom_call.1} parent=4 // pred_check_branch
        %40 = sbr.rel (0) target = $region20
      $region19: #{tpu_custom_call.1} parent=4 // pred_region
        %s42 = ssub.s32 2, 1
        loop: start=0, step=1, limit=1
        $region21: #{tpu_custom_call.1} parent=19 // loop_pre_header
          _
        $region22: #{tpu_custom_call.1} parent=19 // loop_header
          %s44 = sphi 0, %s48
          %p45 = scmp.ge.s32.totalorder %s44, 1
          %s49 = sphi %s22, %s22
          %s50 = sphi [#allocation2], [#allocation2]
        $region23: #{tpu_custom_call.1} parent=19 // loop_header_branch
          %47 = sbr.rel (%p45) target = $region27
        $region24: #{tpu_custom_call.1} parent=19 // loop_body
          %v51 = vld [vmem:[%s49] sm:%s42]
          %52 = vst [vmem:[%s50] sm:%s42] %v51
        $region25: #{tpu_custom_call.1} parent=19 // loop_footer
          %s48 = sadd.s32 1, %s44
        $region26: #{tpu_custom_call.1} parent=19 // loop_footer_branch
          %43 = sbr.rel target = $region22
        $region27: #{tpu_custom_call.1} parent=19 // loop_exit
          _
      $region20: #{tpu_custom_call.1} parent=4 // pred_fallthru
        _
    $region5: #{tpu_custom_call.1} parent=1 // pred_fallthru
      _
    // Predicated region
    $region6: #{tpu_custom_call.1} parent=1 // pred_check
      _
    $region7: #{tpu_custom_call.1} parent=1 // pred_check_branch
      %26 = sbr.rel (0) target = $region9
    $region8: #{tpu_custom_call.1} parent=1 // pred_region
      %s28 = ssub.s32 2, 1
      loop: start=0, step=1, limit=1
      $region10: #{tpu_custom_call.1} parent=8 // loop_pre_header
        _
      $region11: #{tpu_custom_call.1} parent=8 // loop_header
        %s30 = sphi 0, %s34
        %p31 = scmp.ge.s32.totalorder %s30, 1
        %s35 = sphi %s22, %s22
        %s36 = sphi [#allocation2], [#allocation2]
      $region12: #{tpu_custom_call.1} parent=8 // loop_header_branch
        %33 = sbr.rel (%p31) target = $region16
      $region13: #{tpu_custom_call.1} parent=8 // loop_body
        %v37 = vld [vmem:[%s35] sm:%s28]
        %38 = vst [vmem:[%s36] sm:%s28] %v37
      $region14: #{tpu_custom_call.1} parent=8 // loop_footer
        %s34 = sadd.s32 1, %s30
      $region15: #{tpu_custom_call.1} parent=8 // loop_footer_branch
        %29 = sbr.rel target = $region11
      $region16: #{tpu_custom_call.1} parent=8 // loop_exit
        _
    $region9: #{tpu_custom_call.1} parent=1 // pred_fallthru
      _
    // Predicated region
    $region28: #{tpu_custom_call.1} parent=1 // pred_check
      _
    $region29: #{tpu_custom_call.1} parent=1 // pred_check_branch
      %55 = sbr.rel (0) target = $region31
    $region30: #{tpu_custom_call.1} parent=1 // pred_region
      %56 = vsyncadd [#allocation3], 16
    $region31: #{tpu_custom_call.1} parent=1 // pred_fallthru
      _
    %s57 = sadd.s32 %s16, 1
    %s58 = sld [smem:[#allocation5 + %s57]]
    %p59 = scmp.gt.s32.totalorder %s58, 0
    %s60 = scalar_select %p59, %s58, 0
    %p61 = scmp.lt.s32.totalorder %s60, 32
    %s62 = scalar_select %p61, %s60, 32
    %s63 = scalar_lea.vmem %s1, %s62
    %s64 = scalar_lea.vmem [#allocation2], 1
    %s65 = scalar_lea.sflag [#allocation3], 1
    // Predicated region
    $region32: #{tpu_custom_call.1} parent=1 // pred_check
      _
    $region33: #{tpu_custom_call.1} parent=1 // pred_check_branch
      %67 = sbr.rel target = $region35
    $region34: #{tpu_custom_call.1} parent=1 // pred_region
      // Predicated region
      $region47: #{tpu_custom_call.1} parent=34 // pred_check
        _
      $region48: #{tpu_custom_call.1} parent=34 // pred_check_branch
        %83 = sbr.rel (0) target = $region50
      $region49: #{tpu_custom_call.1} parent=34 // pred_region
        %s85 = ssub.s32 2, 1
        loop: start=0, step=1, limit=1
        $region51: #{tpu_custom_call.1} parent=49 // loop_pre_header
          _
        $region52: #{tpu_custom_call.1} parent=49 // loop_header
          %s87 = sphi 0, %s91
          %p88 = scmp.ge.s32.totalorder %s87, 1
          %s92 = sphi %s63, %s63
          %s93 = sphi %s64, %s64
        $region53: #{tpu_custom_call.1} parent=49 // loop_header_branch
          %90 = sbr.rel (%p88) target = $region57
        $region54: #{tpu_custom_call.1} parent=49 // loop_body
          %v94 = vld [vmem:[%s92] sm:%s85]
          %95 = vst [vmem:[%s93] sm:%s85] %v94
        $region55: #{tpu_custom_call.1} parent=49 // loop_footer
          %s91 = sadd.s32 1, %s87
        $region56: #{tpu_custom_call.1} parent=49 // loop_footer_branch
          %86 = sbr.rel target = $region52
        $region57: #{tpu_custom_call.1} parent=49 // loop_exit
          _
      $region50: #{tpu_custom_call.1} parent=34 // pred_fallthru
        _
    $region35: #{tpu_custom_call.1} parent=1 // pred_fallthru
      _
    // Predicated region
    $region36: #{tpu_custom_call.1} parent=1 // pred_check
      _
    $region37: #{tpu_custom_call.1} parent=1 // pred_check_branch
      %69 = sbr.rel (0) target = $region39
    $region38: #{tpu_custom_call.1} parent=1 // pred_region
      %s71 = ssub.s32 2, 1
      loop: start=0, step=1, limit=1
      $region40: #{tpu_custom_call.1} parent=38 // loop_pre_header
        _
      $region41: #{tpu_custom_call.1} parent=38 // loop_header
        %s73 = sphi 0, %s77
        %p74 = scmp.ge.s32.totalorder %s73, 1
        %s78 = sphi %s63, %s63
        %s79 = sphi %s64, %s64
      $region42: #{tpu_custom_call.1} parent=38 // loop_header_branch
        %76 = sbr.rel (%p74) target = $region46
      $region43: #{tpu_custom_call.1} parent=38 // loop_body
        %v80 = vld [vmem:[%s78] sm:%s71]
        %81 = vst [vmem:[%s79] sm:%s71] %v80
      $region44: #{tpu_custom_call.1} parent=38 // loop_footer
        %s77 = sadd.s32 1, %s73
      $region45: #{tpu_custom_call.1} parent=38 // loop_footer_branch
        %72 = sbr.rel target = $region41
      $region46: #{tpu_custom_call.1} parent=38 // loop_exit
        _
    $region39: #{tpu_custom_call.1} parent=1 // pred_fallthru
      _
    // Predicated region
    $region58: #{tpu_custom_call.1} parent=1 // pred_check
      _
    $region59: #{tpu_custom_call.1} parent=1 // pred_check_branch
      %98 = sbr.rel (0) target = $region61
    $region60: #{tpu_custom_call.1} parent=1 // pred_region
      %99 = vsyncadd %s65, 16
    $region61: #{tpu_custom_call.1} parent=1 // pred_fallthru
      _
    %s100 = sadd.s32 %s16, 2
    %s101 = sld [smem:[#allocation5 + %s100]]
    %p102 = scmp.gt.s32.totalorder %s101, 0
    %s103 = scalar_select %p102, %s101, 0
    %p104 = scmp.lt.s32.totalorder %s103, 32
    %s105 = scalar_select %p104, %s103, 32
    %s106 = scalar_lea.vmem %s1, %s105
    %s107 = scalar_lea.vmem [#allocation2], 2
    %s108 = scalar_lea.sflag [#allocation3], 2
    // Predicated region
    $region62: #{tpu_custom_call.1} parent=1 // pred_check
      _
    $region63: #{tpu_custom_call.1} parent=1 // pred_check_branch
      %110 = sbr.rel target = $region65
    $region64: #{tpu_custom_call.1} parent=1 // pred_region
      // Predicated region
      $region77: #{tpu_custom_call.1} parent=64 // pred_check
        _
      $region78: #{tpu_custom_call.1} parent=64 // pred_check_branch
        %126 = sbr.rel (0) target = $region80
      $region79: #{tpu_custom_call.1} parent=64 // pred_region
        %s128 = ssub.s32 2, 1
        loop: start=0, step=1, limit=1
        $region81: #{tpu_custom_call.1} parent=79 // loop_pre_header
          _
        $region82: #{tpu_custom_call.1} parent=79 // loop_header
          %s130 = sphi 0, %s134
          %p131 = scmp.ge.s32.totalorder %s130, 1
          %s135 = sphi %s106, %s106
          %s136 = sphi %s107, %s107
        $region83: #{tpu_custom_call.1} parent=79 // loop_header_branch
          %133 = sbr.rel (%p131) target = $region87
        $region84: #{tpu_custom_call.1} parent=79 // loop_body
          %v137 = vld [vmem:[%s135] sm:%s128]
          %138 = vst [vmem:[%s136] sm:%s128] %v137
        $region85: #{tpu_custom_call.1} parent=79 // loop_footer
          %s134 = sadd.s32 1, %s130
        $region86: #{tpu_custom_call.1} parent=79 // loop_footer_branch
          %129 = sbr.rel target = $region82
        $region87: #{tpu_custom_call.1} parent=79 // loop_exit
          _
      $region80: #{tpu_custom_call.1} parent=64 // pred_fallthru
        _
    $region65: #{tpu_custom_call.1} parent=1 // pred_fallthru
      _
    // Predicated region
    $region66: #{tpu_custom_call.1} parent=1 // pred_check
      _
    $region67: #{tpu_custom_call.1} parent=1 // pred_check_branch
      %112 = sbr.rel (0) target = $region69
    $region68: #{tpu_custom_call.1} parent=1 // pred_region
      %s114 = ssub.s32 2, 1
      loop: start=0, step=1, limit=1
      $region70: #{tpu_custom_call.1} parent=68 // loop_pre_header
        _
      $region71: #{tpu_custom_call.1} parent=68 // loop_header
        %s116 = sphi 0, %s120
        %p117 = scmp.ge.s32.totalorder %s116, 1
        %s121 = sphi %s106, %s106
        %s122 = sphi %s107, %s107
      $region72: #{tpu_custom_call.1} parent=68 // loop_header_branch
        %119 = sbr.rel (%p117) target = $region76
      $region73: #{tpu_custom_call.1} parent=68 // loop_body
        %v123 = vld [vmem:[%s121] sm:%s114]
        %124 = vst [vmem:[%s122] sm:%s114] %v123
      $region74: #{tpu_custom_call.1} parent=68 // loop_footer
        %s120 = sadd.s32 1, %s116
      $region75: #{tpu_custom_call.1} parent=68 // loop_footer_branch
        %115 = sbr.rel target = $region71
      $region76: #{tpu_custom_call.1} parent=68 // loop_exit
        _
    $region69: #{tpu_custom_call.1} parent=1 // pred_fallthru
      _
    // Predicated region
    $region88: #{tpu_custom_call.1} parent=1 // pred_check
      _
    $region89: #{tpu_custom_call.1} parent=1 // pred_check_branch
      %141 = sbr.rel (0) target = $region91
    $region90: #{tpu_custom_call.1} parent=1 // pred_region
      %142 = vsyncadd %s108, 16
    $region91: #{tpu_custom_call.1} parent=1 // pred_fallthru
      _
    %s143 = sadd.s32 %s16, 3
    %s144 = sld [smem:[#allocation5 + %s143]]
    %p145 = scmp.gt.s32.totalorder %s144, 0
    %s146 = scalar_select %p145, %s144, 0
    %p147 = scmp.lt.s32.totalorder %s146, 32
    %s148 = scalar_select %p147, %s146, 32
    %s149 = scalar_lea.vmem %s1, %s148
    %s150 = scalar_lea.vmem [#allocation2], 3
    %s151 = scalar_lea.sflag [#allocation3], 3
    // Predicated region
    $region92: #{tpu_custom_call.1} parent=1 // pred_check
      _
    $region93: #{tpu_custom_call.1} parent=1 // pred_check_branch
      %153 = sbr.rel target = $region95
    $region94: #{tpu_custom_call.1} parent=1 // pred_region
      // Predicated region
      $region107: #{tpu_custom_call.1} parent=94 // pred_check
        _
      $region108: #{tpu_custom_call.1} parent=94 // pred_check_branch
        %169 = sbr.rel (0) target = $region110
      $region109: #{tpu_custom_call.1} parent=94 // pred_region
        %s171 = ssub.s32 2, 1
        loop: start=0, step=1, limit=1
        $region111: #{tpu_custom_call.1} parent=109 // loop_pre_header
          _
        $region112: #{tpu_custom_call.1} parent=109 // loop_header
          %s173 = sphi 0, %s177
          %p174 = scmp.ge.s32.totalorder %s173, 1
          %s178 = sphi %s149, %s149
          %s179 = sphi %s150, %s150
        $region113: #{tpu_custom_call.1} parent=109 // loop_header_branch
          %176 = sbr.rel (%p174) target = $region117
        $region114: #{tpu_custom_call.1} parent=109 // loop_body
          %v180 = vld [vmem:[%s178] sm:%s171]
          %181 = vst [vmem:[%s179] sm:%s171] %v180
        $region115: #{tpu_custom_call.1} parent=109 // loop_footer
          %s177 = sadd.s32 1, %s173
        $region116: #{tpu_custom_call.1} parent=109 // loop_footer_branch
          %172 = sbr.rel target = $region112
        $region117: #{tpu_custom_call.1} parent=109 // loop_exit
          _
      $region110: #{tpu_custom_call.1} parent=94 // pred_fallthru
        _
    $region95: #{tpu_custom_call.1} parent=1 // pred_fallthru
      _
    // Predicated region
    $region96: #{tpu_custom_call.1} parent=1 // pred_check
      _
    $region97: #{tpu_custom_call.1} parent=1 // pred_check_branch
      %155 = sbr.rel (0) target = $region99
    $region98: #{tpu_custom_call.1} parent=1 // pred_region
      %s157 = ssub.s32 2, 1
      loop: start=0, step=1, limit=1
      $region100: #{tpu_custom_call.1} parent=98 // loop_pre_header
        _
      $region101: #{tpu_custom_call.1} parent=98 // loop_header
        %s159 = sphi 0, %s163
        %p160 = scmp.ge.s32.totalorder %s159, 1
        %s164 = sphi %s149, %s149
        %s165 = sphi %s150, %s150
      $region102: #{tpu_custom_call.1} parent=98 // loop_header_branch
        %162 = sbr.rel (%p160) target = $region106
      $region103: #{tpu_custom_call.1} parent=98 // loop_body
        %v166 = vld [vmem:[%s164] sm:%s157]
        %167 = vst [vmem:[%s165] sm:%s157] %v166
      $region104: #{tpu_custom_call.1} parent=98 // loop_footer
        %s163 = sadd.s32 1, %s159
      $region105: #{tpu_custom_call.1} parent=98 // loop_footer_branch
        %158 = sbr.rel target = $region101
      $region106: #{tpu_custom_call.1} parent=98 // loop_exit
        _
    $region99: #{tpu_custom_call.1} parent=1 // pred_fallthru
      _
    // Predicated region
    $region118: #{tpu_custom_call.1} parent=1 // pred_check
      _
    $region119: #{tpu_custom_call.1} parent=1 // pred_check_branch
      %184 = sbr.rel (0) target = $region121
    $region120: #{tpu_custom_call.1} parent=1 // pred_region
      %185 = vsyncadd %s151, 16
    $region121: #{tpu_custom_call.1} parent=1 // pred_fallthru
      _
    %s186 = sadd.s32 %s16, 4
    %s187 = sld [smem:[#allocation5 + %s186]]
    %p188 = scmp.gt.s32.totalorder %s187, 0
    %s189 = scalar_select %p188, %s187, 0
    %p190 = scmp.lt.s32.totalorder %s189, 32
    %s191 = scalar_select %p190, %s189, 32
    %s192 = scalar_lea.vmem %s1, %s191
    %s193 = scalar_lea.vmem [#allocation2], 4
    %s194 = scalar_lea.sflag [#allocation3], 4
    // Predicated region
    $region122: #{tpu_custom_call.1} parent=1 // pred_check
      _
    $region123: #{tpu_custom_call.1} parent=1 // pred_check_branch
      %196 = sbr.rel target = $region125
    $region124: #{tpu_custom_call.1} parent=1 // pred_region
      // Predicated region
      $region137: #{tpu_custom_call.1} parent=124 // pred_check
        _
      $region138: #{tpu_custom_call.1} parent=124 // pred_check_branch
        %212 = sbr.rel (0) target = $region140
      $region139: #{tpu_custom_call.1} parent=124 // pred_region
        %s214 = ssub.s32 2, 1
        loop: start=0, step=1, limit=1
        $region141: #{tpu_custom_call.1} parent=139 // loop_pre_header
          _
        $region142: #{tpu_custom_call.1} parent=139 // loop_header
          %s216 = sphi 0, %s220
          %p217 = scmp.ge.s32.totalorder %s216, 1
          %s221 = sphi %s192, %s192
          %s222 = sphi %s193, %s193
        $region143: #{tpu_custom_call.1} parent=139 // loop_header_branch
          %219 = sbr.rel (%p217) target = $region147
        $region144: #{tpu_custom_call.1} parent=139 // loop_body
          %v223 = vld [vmem:[%s221] sm:%s214]
          %224 = vst [vmem:[%s222] sm:%s214] %v223
        $region145: #{tpu_custom_call.1} parent=139 // loop_footer
          %s220 = sadd.s32 1, %s216
        $region146: #{tpu_custom_call.1} parent=139 // loop_footer_branch
          %215 = sbr.rel target = $region142
        $region147: #{tpu_custom_call.1} parent=139 // loop_exit
          _
      $region140: #{tpu_custom_call.1} parent=124 // pred_fallthru
        _
    $region125: #{tpu_custom_call.1} parent=1 // pred_fallthru
      _
    // Predicated region
    $region126: #{tpu_custom_call.1} parent=1 // pred_check
      _
    $region127: #{tpu_custom_call.1} parent=1 // pred_check_branch
      %198 = sbr.rel (0) target = $region129
    $region128: #{tpu_custom_call.1} parent=1 // pred_region
      %s200 = ssub.s32 2, 1
      loop: start=0, step=1, limit=1
      $region130: #{tpu_custom_call.1} parent=128 // loop_pre_header
        _
      $region131: #{tpu_custom_call.1} parent=128 // loop_header
        %s202 = sphi 0, %s206
        %p203 = scmp.ge.s32.totalorder %s202, 1
        %s207 = sphi %s192, %s192
        %s208 = sphi %s193, %s193
      $region132: #{tpu_custom_call.1} parent=128 // loop_header_branch
        %205 = sbr.rel (%p203) target = $region136
      $region133: #{tpu_custom_call.1} parent=128 // loop_body
        %v209 = vld [vmem:[%s207] sm:%s200]
        %210 = vst [vmem:[%s208] sm:%s200] %v209
      $region134: #{tpu_custom_call.1} parent=128 // loop_footer
        %s206 = sadd.s32 1, %s202
      $region135: #{tpu_custom_call.1} parent=128 // loop_footer_branch
        %201 = sbr.rel target = $region131
      $region136: #{tpu_custom_call.1} parent=128 // loop_exit
        _
    $region129: #{tpu_custom_call.1} parent=1 // pred_fallthru
      _
    // Predicated region
    $region148: #{tpu_custom_call.1} parent=1 // pred_check
      _
    $region149: #{tpu_custom_call.1} parent=1 // pred_check_branch
      %227 = sbr.rel (0) target = $region151
    $region150: #{tpu_custom_call.1} parent=1 // pred_region
      %228 = vsyncadd %s194, 16
    $region151: #{tpu_custom_call.1} parent=1 // pred_fallthru
      _
    %s229 = sadd.s32 %s16, 5
    %s230 = sld [smem:[#allocation5 + %s229]]
    %p231 = scmp.gt.s32.totalorder %s230, 0
    %s232 = scalar_select %p231, %s230, 0
    %p233 = scmp.lt.s32.totalorder %s232, 32
    %s234 = scalar_select %p233, %s232, 32
    %s235 = scalar_lea.vmem %s1, %s234
    %s236 = scalar_lea.vmem [#allocation2], 5
    %s237 = scalar_lea.sflag [#allocation3], 5
    // Predicated region
    $region152: #{tpu_custom_call.1} parent=1 // pred_check
      _
    $region153: #{tpu_custom_call.1} parent=1 // pred_check_branch
      %239 = sbr.rel target = $region155
    $region154: #{tpu_custom_call.1} parent=1 // pred_region
      // Predicated region
      $region167: #{tpu_custom_call.1} parent=154 // pred_check
        _
      $region168: #{tpu_custom_call.1} parent=154 // pred_check_branch
        %255 = sbr.rel (0) target = $region170
      $region169: #{tpu_custom_call.1} parent=154 // pred_region
        %s257 = ssub.s32 2, 1
        loop: start=0, step=1, limit=1
        $region171: #{tpu_custom_call.1} parent=169 // loop_pre_header
          _
        $region172: #{tpu_custom_call.1} parent=169 // loop_header
          %s259 = sphi 0, %s263
          %p260 = scmp.ge.s32.totalorder %s259, 1
          %s264 = sphi %s235, %s235
          %s265 = sphi %s236, %s236
        $region173: #{tpu_custom_call.1} parent=169 // loop_header_branch
          %262 = sbr.rel (%p260) target = $region177
        $region174: #{tpu_custom_call.1} parent=169 // loop_body
          %v266 = vld [vmem:[%s264] sm:%s257]
          %267 = vst [vmem:[%s265] sm:%s257] %v266
        $region175: #{tpu_custom_call.1} parent=169 // loop_footer
          %s263 = sadd.s32 1, %s259
        $region176: #{tpu_custom_call.1} parent=169 // loop_footer_branch
          %258 = sbr.rel target = $region172
        $region177: #{tpu_custom_call.1} parent=169 // loop_exit
          _
      $region170: #{tpu_custom_call.1} parent=154 // pred_fallthru
        _
    $region155: #{tpu_custom_call.1} parent=1 // pred_fallthru
      _
    // Predicated region
    $region156: #{tpu_custom_call.1} parent=1 // pred_check
      _
    $region157: #{tpu_custom_call.1} parent=1 // pred_check_branch
      %241 = sbr.rel (0) target = $region159
    $region158: #{tpu_custom_call.1} parent=1 // pred_region
      %s243 = ssub.s32 2, 1
      loop: start=0, step=1, limit=1
      $region160: #{tpu_custom_call.1} parent=158 // loop_pre_header
        _
      $region161: #{tpu_custom_call.1} parent=158 // loop_header
        %s245 = sphi 0, %s249
        %p246 = scmp.ge.s32.totalorder %s245, 1
        %s250 = sphi %s235, %s235
        %s251 = sphi %s236, %s236
      $region162: #{tpu_custom_call.1} parent=158 // loop_header_branch
        %248 = sbr.rel (%p246) target = $region166
      $region163: #{tpu_custom_call.1} parent=158 // loop_body
        %v252 = vld [vmem:[%s250] sm:%s243]
        %253 = vst [vmem:[%s251] sm:%s243] %v252
      $region164: #{tpu_custom_call.1} parent=158 // loop_footer
        %s249 = sadd.s32 1, %s245
      $region165: #{tpu_custom_call.1} parent=158 // loop_footer_branch
        %244 = sbr.rel target = $region161
      $region166: #{tpu_custom_call.1} parent=158 // loop_exit
        _
    $region159: #{tpu_custom_call.1} parent=1 // pred_fallthru
      _
    // Predicated region
    $region178: #{tpu_custom_call.1} parent=1 // pred_check
      _
    $region179: #{tpu_custom_call.1} parent=1 // pred_check_branch
      %270 = sbr.rel (0) target = $region181
    $region180: #{tpu_custom_call.1} parent=1 // pred_region
      %271 = vsyncadd %s237, 16
    $region181: #{tpu_custom_call.1} parent=1 // pred_fallthru
      _
    %s272 = sadd.s32 %s16, 6
    %s273 = sld [smem:[#allocation5 + %s272]]
    %p274 = scmp.gt.s32.totalorder %s273, 0
    %s275 = scalar_select %p274, %s273, 0
    %p276 = scmp.lt.s32.totalorder %s275, 32
    %s277 = scalar_select %p276, %s275, 32
    %s278 = scalar_lea.vmem %s1, %s277
    %s279 = scalar_lea.vmem [#allocation2], 6
    %s280 = scalar_lea.sflag [#allocation3], 6
    // Predicated region
    $region182: #{tpu_custom_call.1} parent=1 // pred_check
      _
    $region183: #{tpu_custom_call.1} parent=1 // pred_check_branch
      %282 = sbr.rel target = $region185
    $region184: #{tpu_custom_call.1} parent=1 // pred_region
      // Predicated region
      $region197: #{tpu_custom_call.1} parent=184 // pred_check
        _
      $region198: #{tpu_custom_call.1} parent=184 // pred_check_branch
        %298 = sbr.rel (0) target = $region200
      $region199: #{tpu_custom_call.1} parent=184 // pred_region
        %s300 = ssub.s32 2, 1
        loop: start=0, step=1, limit=1
        $region201: #{tpu_custom_call.1} parent=199 // loop_pre_header
          _
        $region202: #{tpu_custom_call.1} parent=199 // loop_header
          %s302 = sphi 0, %s306
          %p303 = scmp.ge.s32.totalorder %s302, 1
          %s307 = sphi %s278, %s278
          %s308 = sphi %s279, %s279
        $region203: #{tpu_custom_call.1} parent=199 // loop_header_branch
          %305 = sbr.rel (%p303) target = $region207
        $region204: #{tpu_custom_call.1} parent=199 // loop_body
          %v309 = vld [vmem:[%s307] sm:%s300]
          %310 = vst [vmem:[%s308] sm:%s300] %v309
        $region205: #{tpu_custom_call.1} parent=199 // loop_footer
          %s306 = sadd.s32 1, %s302
        $region206: #{tpu_custom_call.1} parent=199 // loop_footer_branch
          %301 = sbr.rel target = $region202
        $region207: #{tpu_custom_call.1} parent=199 // loop_exit
          _
      $region200: #{tpu_custom_call.1} parent=184 // pred_fallthru
        _
    $region185: #{tpu_custom_call.1} parent=1 // pred_fallthru
      _
    // Predicated region
    $region186: #{tpu_custom_call.1} parent=1 // pred_check
      _
    $region187: #{tpu_custom_call.1} parent=1 // pred_check_branch
      %284 = sbr.rel (0) target = $region189
    $region188: #{tpu_custom_call.1} parent=1 // pred_region
      %s286 = ssub.s32 2, 1
      loop: start=0, step=1, limit=1
      $region190: #{tpu_custom_call.1} parent=188 // loop_pre_header
        _
      $region191: #{tpu_custom_call.1} parent=188 // loop_header
        %s288 = sphi 0, %s292
        %p289 = scmp.ge.s32.totalorder %s288, 1
        %s293 = sphi %s278, %s278
        %s294 = sphi %s279, %s279
      $region192: #{tpu_custom_call.1} parent=188 // loop_header_branch
        %291 = sbr.rel (%p289) target = $region196
      $region193: #{tpu_custom_call.1} parent=188 // loop_body
        %v295 = vld [vmem:[%s293] sm:%s286]
        %296 = vst [vmem:[%s294] sm:%s286] %v295
      $region194: #{tpu_custom_call.1} parent=188 // loop_footer
        %s292 = sadd.s32 1, %s288
      $region195: #{tpu_custom_call.1} parent=188 // loop_footer_branch
        %287 = sbr.rel target = $region191
      $region196: #{tpu_custom_call.1} parent=188 // loop_exit
        _
    $region189: #{tpu_custom_call.1} parent=1 // pred_fallthru
      _
    // Predicated region
    $region208: #{tpu_custom_call.1} parent=1 // pred_check
      _
    $region209: #{tpu_custom_call.1} parent=1 // pred_check_branch
      %313 = sbr.rel (0) target = $region211
    $region210: #{tpu_custom_call.1} parent=1 // pred_region
      %314 = vsyncadd %s280, 16
    $region211: #{tpu_custom_call.1} parent=1 // pred_fallthru
      _
    %s315 = sadd.s32 %s16, 7
    %s316 = sld [smem:[#allocation5 + %s315]]
    %p317 = scmp.gt.s32.totalorder %s316, 0
    %s318 = scalar_select %p317, %s316, 0
    %p319 = scmp.lt.s32.totalorder %s318, 32
    %s320 = scalar_select %p319, %s318, 32
    %s321 = scalar_lea.vmem %s1, %s320
    %s322 = scalar_lea.vmem [#allocation2], 7
    %s323 = scalar_lea.sflag [#allocation3], 7
    // Predicated region
    $region212: #{tpu_custom_call.1} parent=1 // pred_check
      _
    $region213: #{tpu_custom_call.1} parent=1 // pred_check_branch
      %325 = sbr.rel target = $region215
    $region214: #{tpu_custom_call.1} parent=1 // pred_region
      // Predicated region
      $region227: #{tpu_custom_call.1} parent=214 // pred_check
        _
      $region228: #{tpu_custom_call.1} parent=214 // pred_check_branch
        %341 = sbr.rel (0) target = $region230
      $region229: #{tpu_custom_call.1} parent=214 // pred_region
        %s343 = ssub.s32 2, 1
        loop: start=0, step=1, limit=1
        $region231: #{tpu_custom_call.1} parent=229 // loop_pre_header
          _
        $region232: #{tpu_custom_call.1} parent=229 // loop_header
          %s345 = sphi 0, %s349
          %p346 = scmp.ge.s32.totalorder %s345, 1
          %s350 = sphi %s321, %s321
          %s351 = sphi %s322, %s322
        $region233: #{tpu_custom_call.1} parent=229 // loop_header_branch
          %348 = sbr.rel (%p346) target = $region237
        $region234: #{tpu_custom_call.1} parent=229 // loop_body
          %v352 = vld [vmem:[%s350] sm:%s343]
          %353 = vst [vmem:[%s351] sm:%s343] %v352
        $region235: #{tpu_custom_call.1} parent=229 // loop_footer
          %s349 = sadd.s32 1, %s345
        $region236: #{tpu_custom_call.1} parent=229 // loop_footer_branch
          %344 = sbr.rel target = $region232
        $region237: #{tpu_custom_call.1} parent=229 // loop_exit
          _
      $region230: #{tpu_custom_call.1} parent=214 // pred_fallthru
        _
    $region215: #{tpu_custom_call.1} parent=1 // pred_fallthru
      _
    // Predicated region
    $region216: #{tpu_custom_call.1} parent=1 // pred_check
      _
    $region217: #{tpu_custom_call.1} parent=1 // pred_check_branch
      %327 = sbr.rel (0) target = $region219
    $region218: #{tpu_custom_call.1} parent=1 // pred_region
      %s329 = ssub.s32 2, 1
      loop: start=0, step=1, limit=1
      $region220: #{tpu_custom_call.1} parent=218 // loop_pre_header
        _
      $region221: #{tpu_custom_call.1} parent=218 // loop_header
        %s331 = sphi 0, %s335
        %p332 = scmp.ge.s32.totalorder %s331, 1
        %s336 = sphi %s321, %s321
        %s337 = sphi %s322, %s322
      $region222: #{tpu_custom_call.1} parent=218 // loop_header_branch
        %334 = sbr.rel (%p332) target = $region226
      $region223: #{tpu_custom_call.1} parent=218 // loop_body
        %v338 = vld [vmem:[%s336] sm:%s329]
        %339 = vst [vmem:[%s337] sm:%s329] %v338
      $region224: #{tpu_custom_call.1} parent=218 // loop_footer
        %s335 = sadd.s32 1, %s331
      $region225: #{tpu_custom_call.1} parent=218 // loop_footer_branch
        %330 = sbr.rel target = $region221
      $region226: #{tpu_custom_call.1} parent=218 // loop_exit
        _
    $region219: #{tpu_custom_call.1} parent=1 // pred_fallthru
      _
    // Predicated region
    $region238: #{tpu_custom_call.1} parent=1 // pred_check
      _
    $region239: #{tpu_custom_call.1} parent=1 // pred_check_branch
      %356 = sbr.rel (0) target = $region241
    $region240: #{tpu_custom_call.1} parent=1 // pred_region
      %357 = vsyncadd %s323, 16
    $region241: #{tpu_custom_call.1} parent=1 // pred_fallthru
      _
    %s358 = smul.u32 1, 1
    %s359 = sshll.u32 %s358, 4
    %360 = dma.done [#allocation3], %s359
    %s361 = sshll.u32 %s358, 4
    %362 = dma.done %s65, %s361
    %s363 = sshll.u32 %s358, 4
    %364 = dma.done %s108, %s363
    %s365 = sshll.u32 %s358, 4
    %366 = dma.done %s151, %s365
    %s367 = sshll.u32 %s358, 4
    %368 = dma.done %s194, %s367
    %s369 = sshll.u32 %s358, 4
    %370 = dma.done %s237, %s369
    %s371 = sshll.u32 %s358, 4
    %372 = dma.done %s280, %s371
    %s373 = sshll.u32 %s358, 4
    %374 = dma.done %s323, %s373
    %v375 = vld [vmem:[#allocation2] sm:$0xff]
    %vm376 = vcmask 130048
    %377 = vst.msk [vmem:[#allocation6] sm:$0xff] %vm376, %v375
    // Predicated region
    $region242: #{tpu_custom_call.1} parent=1 // pred_check
      _
    $region243: #{tpu_custom_call.1} parent=1 // pred_check_branch
      %379 = sbr.rel (0) target = $region245
    $region244: #{tpu_custom_call.1} parent=1 // pred_region
      %381 = vsyncadd [#allocation7], 0
      %s383 = sshll.u32 [#allocation6], 4
      %s384 = int_to_ptr.vmem [resolvable:$true] %s383
      %s385 = sshll.u32 %s2, 4
      %s386 = int_to_ptr.hbm [resolvable:$true] %s385
      %388 = dma.vmem_to_hbm [thread:$0]  %s384, 128, %s386, [#allocation7]
    $region245: #{tpu_custom_call.1} parent=1 // pred_fallthru
      _
    // Predicated region
    $region246: #{tpu_custom_call.1} parent=1 // pred_check
      _
    $region247: #{tpu_custom_call.1} parent=1 // pred_check_branch
      %390 = sbr.rel (0) target = $region249
    $region248: #{tpu_custom_call.1} parent=1 // pred_region
      %392 = dma.done [#allocation7], 128
    $region249: #{tpu_custom_call.1} parent=1 // pred_fallthru
      _
    %393 = vsyncpa [#allocation7], 1
  %394 = vsyncmov [#allocation3]
  %s395 = vpop.sfrf %394
  %p396 = scmp.eq.s32.totalorder %s395, 0
  %p397 = pneg %p396
  %399 = shalt.err (%p397)
  %s400 = scalar_lea.sflag [#allocation3], 1
  %401 = vsyncmov %s400
  %s402 = vpop.sfrf %401
  %p403 = scmp.eq.s32.totalorder %s402, 0
  %p404 = pneg %p403
  %406 = shalt.err (%p404)
  %s407 = scalar_lea.sflag [#allocation3], 2
  %408 = vsyncmov %s407
  %s409 = vpop.sfrf %408
  %p410 = scmp.eq.s32.totalorder %s409, 0
  %p411 = pneg %p410
  %413 = shalt.err (%p411)
  %s414 = scalar_lea.sflag [#allocation3], 3
  %415 = vsyncmov %s414
  %s416 = vpop.sfrf %415
  %p417 = scmp.eq.s32.totalorder %s416, 0
  %p418 = pneg %p417
  %420 = shalt.err (%p418)
  %s421 = scalar_lea.sflag [#allocation3], 4
  %422 = vsyncmov %s421
  %s423 = vpop.sfrf %422
  %p424 = scmp.eq.s32.totalorder %s423, 0
  %p425 = pneg %p424
  %427 = shalt.err (%p425)
  %s428 = scalar_lea.sflag [#allocation3], 5
  %429 = vsyncmov %s428
  %s430 = vpop.sfrf %429
  %p431 = scmp.eq.s32.totalorder %s430, 0
  %p432 = pneg %p431
  %434 = shalt.err (%p432)
  %s435 = scalar_lea.sflag [#allocation3], 6
  %436 = vsyncmov %s435
  %s437 = vpop.sfrf %436
  %p438 = scmp.eq.s32.totalorder %s437, 0
  %p439 = pneg %p438
  %441 = shalt.err (%p439)
  %s442 = scalar_lea.sflag [#allocation3], 7
  %443 = vsyncmov %s442
  %s444 = vpop.sfrf %443
  %p445 = scmp.eq.s32.totalorder %s444, 0
  %p446 = pneg %p445
  %448 = shalt.err (%p446)

</llo_original>
